<compile_context>
chip_gen: v7x
topology: tpu7x:2x2x1
jax: 0.10.0
libtpu: 0.0.40
codegen_flags: <defaults>
</compile_context>

<pallas_src>
import jax
import jax.numpy as jnp
from jax.experimental import pallas as pl
from jax.experimental.pallas import tpu as pltpu


def _final_kernel(w_ref, x_ref, o_ref):
    # w_ref: (C,)        f32 in SMEM (scalar-prefetched conv weight)
    # x_ref: (C, tr, L)  input pixel tile, channels on the leading axis
    # o_ref: (tr, L)     sublane/lane-dense output tile
    C = x_ref.shape[0]
    # Split the serial FMA chain across a few partial accumulators when C is
    # large enough for the dependency chain to matter on the 4 VALU slots.
    n_acc = 4 if C >= 32 else (2 if C >= 8 else 1)
    accs = [None] * n_acc
    for c in range(C):  # C is small and static -> fully unrolled
        term = x_ref[c].astype(jnp.float32) * w_ref[c]
        k = c % n_acc
        accs[k] = term if accs[k] is None else accs[k] + term
    acc = accs[0]
    for k in range(1, n_acc):
        if accs[k] is not None:
            acc = acc + accs[k]
    o_ref[...] = jnp.tanh(acc).astype(o_ref.dtype)


def _vmem_capacity_bytes():
    """Physical VMEM per TensorCore; conservative fallback if the query fails."""
    try:
        return int(pltpu.get_tpu_info().vmem_capacity_bytes)
    except Exception:
        return 64 << 20  # v7x per-TC capacity (smallest of v5e/v6e/v7x)


def _sublane_multiple(dtype):
    """Required second-to-last block-dim multiple: f32 -> 8, bf16 -> 16, 8-bit -> 32."""
    bits = jnp.dtype(dtype).itemsize * 8
    return max(8, 256 // bits)


def _choose_tiling(M, C, N, itemsize, sub, budget_bytes):
    """Pick (R, L, tr) with M = R * L such that
       * L is a divisor of M that is a multiple of 128 when one exists
         (lane-dense, unmasked output stores), else L = M (still layout-legal),
       * tr is a multiple of `sub` dividing R, or tr == R (full extent),
       * the double-buffered live footprint 2*(C+1)*tr*L*itemsize fits the budget,
    preferring lane density, then >= 2 grid programs (both v7x TensorCores),
    then the biggest tile (fewest grid steps for an HBM-bound kernel)."""
    lane_cands = [c for c in range(128, min(M, 16384) + 1, 128) if M % c == 0]
    lane_cands.sort(reverse=True)
    cands = lane_cands + ([M] if M not in lane_cands else [])

    best = None  # ((R, L, tr), score)
    for L in cands:
        R = M // L
        per_row = 2 * (C + 1) * L * itemsize  # dbl-buffered input + output, one row
        max_tr = budget_bytes // per_row
        tr_cands = {d for d in range(sub, min(R, max_tr) + 1, sub) if R % d == 0}
        if R <= max_tr:
            tr_cands.add(R)  # full-extent block: legal regardless of divisibility
        for tr in tr_cands:
            programs = N * (R // tr)
            score = (
                L % 128 == 0,        # lane-dense output stores (biggest lever)
                min(programs, 2),    # feed both TensorCores on v7x
                tr * L,              # big tiles amortize the ~0.35us step cost
                min(programs, 8),    # mild preference for pipeline overlap
            )
            if best is None or score > best[1]:
                best = ((R, L, tr), score)

    if best is None:
        # Degenerate (tiny M / enormous C): single full-extent row.
        return 1, M, 1
    return best[0]


def final_forward(x_nchw, weight):
    """Equivalent of Final(filters).forward(x_nchw).

    x_nchw : (N, C, H, W) float32
    weight : (1, C, 1, 1) float32  -- Conv2d(C, 1, 1, bias=False) weight
    returns (N, 1, H, W) float32
    """
    N, C, H, W = x_nchw.shape
    M = H * W
    itemsize = jnp.dtype(x_nchw.dtype).itemsize
    sub = _sublane_multiple(x_nchw.dtype)

    cap = _vmem_capacity_bytes()
    # Total double-buffered footprint target, generation-aware:
    #   v7x (64 MiB VMEM/TC) -> ~21 MiB, v5e/v6e (128 MiB) -> 24 MiB.
    budget = min(cap // 3, 24 << 20)

    R, L, tr = _choose_tiling(M, C, N, itemsize, sub, budget)

    footprint = 2 * (C + 1) * tr * L * itemsize
    vmem_limit = int(min(cap // 2, max(2 * footprint, 16 << 20)))

    # Free (row-major) reshapes only -- no transpose, no extra HBM traffic.
    x_r = x_nchw.reshape(N, C, R, L)
    w_flat = weight.reshape(C).astype(jnp.float32)

    grid = (N, R // tr)

    cost = pl.CostEstimate(
        flops=2 * C * N * M,
        transcendentals=N * M,
        bytes_accessed=(C + 1) * N * M * itemsize,
    )

    out = pl.pallas_call(
        _final_kernel,
        out_shape=jax.ShapeDtypeStruct((N, 1, R, L), x_nchw.dtype),
        grid_spec=pltpu.PrefetchScalarGridSpec(
            # conv weight: scalar-prefetched -> one SMEM copy before the grid
            num_scalar_prefetch=1,
            grid=grid,
            in_specs=[
                # pixel tile: squeeze batch dim, keep all channels, tile rows
                # TODO(synk): sweep pipeline_mode=pl.Buffered(3) here on v7x.
                pl.BlockSpec((None, C, tr, L), lambda n, j, w: (n, 0, j, 0)),
            ],
            out_specs=pl.BlockSpec(
                (None, None, tr, L), lambda n, j, w: (n, 0, j, 0)
            ),
        ),
        compiler_params=pltpu.CompilerParams(
            dimension_semantics=("parallel", "parallel"),
            vmem_limit_bytes=vmem_limit,
        ),
        cost_estimate=cost,
    )(w_flat, x_r)

    # (N, 1, R, L) -> (N, 1, H, W): free reshape, same row-major layout.
    return out.reshape(N, 1, H, W)


if __name__ == "__main__":
    key = jax.random.PRNGKey(0)
    k_x, k_w = jax.random.split(key)

    N, C, H, W = 2, 4, 16, 16  # filters = 4

    x = jax.random.normal(k_x, (N, C, H, W), dtype=jnp.float32)

    # Deterministic Conv2d weight init (PyTorch default: U(-b, b), b = 1/sqrt(fan_in))
    fan_in = C * 1 * 1
    bound = 1.0 / (fan_in ** 0.5)
    weight = jax.random.uniform(
        k_w, (1, C, 1, 1), dtype=jnp.float32, minval=-bound, maxval=bound
    )

    out = final_forward(x, weight)
    out = jax.block_until_ready(out)

    # Reference: 1x1 conv (channel-weighted sum) + tanh, in plain JAX.
    ref = jnp.tanh(jnp.einsum("nchw,oc->nohw", x, weight.reshape(1, C)))
    assert out.shape == (N, 1, H, W)
    assert jnp.allclose(out, ref, atol=1e-5, rtol=1e-5)

    print("KERNEL_OK")
</pallas_src>

<mosaic_0001>
module attributes {stable_mosaic.version = 11 : i64} {
  func.func @_final_kernel(%arg0: i32, %arg1: i32, %arg2: memref<4xf32, #tpu.memory_space<smem>>, %arg3: memref<1x4x1x256xf32, #tpu.memory_space<vmem>>, %arg4: memref<1x1x1x256xf32, #tpu.memory_space<vmem>>) attributes {dimension_semantics = [#tpu.dimension_semantics<parallel>, #tpu.dimension_semantics<parallel>], iteration_bounds = array<i64: 2, 1>, scalar_prefetch = 1 : i64, scratch_operands = 0 : i64, tpu.core_type = #tpu.core_type<tc>, window_params = [{transform_indices = @transform_0, window_bounds = array<i64: 1, 4, 1, 256>}, {transform_indices = @transform_1, window_bounds = array<i64: 1, 1, 1, 256>}]} {
    %c0 = arith.constant 0 : index
    %c0_0 = arith.constant 0 : index
    %c0_1 = arith.constant 0 : index
    %c0_2 = arith.constant 0 : index
    %0 = vector.load %arg3[%c0, %c0_0, %c0_1, %c0_2] : memref<1x4x1x256xf32, #tpu.memory_space<vmem>>, vector<1x1x1x256xf32>
    %1 = vector.shape_cast %0 : vector<1x1x1x256xf32> to vector<1x256xf32>
    %c0_3 = arith.constant 0 : index
    %2 = memref.load %arg2[%c0_3] : memref<4xf32, #tpu.memory_space<smem>>
    %3 = vector.broadcast %2 : f32 to vector<1x256xf32>
    %4 = arith.mulf %1, %3 : vector<1x256xf32>
    %c0_4 = arith.constant 0 : index
    %c1 = arith.constant 1 : index
    %c0_5 = arith.constant 0 : index
    %c0_6 = arith.constant 0 : index
    %5 = vector.load %arg3[%c0_4, %c1, %c0_5, %c0_6] : memref<1x4x1x256xf32, #tpu.memory_space<vmem>>, vector<1x1x1x256xf32>
    %6 = vector.shape_cast %5 : vector<1x1x1x256xf32> to vector<1x256xf32>
    %c1_7 = arith.constant 1 : index
    %7 = memref.load %arg2[%c1_7] : memref<4xf32, #tpu.memory_space<smem>>
    %8 = vector.broadcast %7 : f32 to vector<1x256xf32>
    %9 = arith.mulf %6, %8 : vector<1x256xf32>
    %10 = arith.addf %4, %9 : vector<1x256xf32>
    %c0_8 = arith.constant 0 : index
    %c2 = arith.constant 2 : index
    %c0_9 = arith.constant 0 : index
    %c0_10 = arith.constant 0 : index
    %11 = vector.load %arg3[%c0_8, %c2, %c0_9, %c0_10] : memref<1x4x1x256xf32, #tpu.memory_space<vmem>>, vector<1x1x1x256xf32>
    %12 = vector.shape_cast %11 : vector<1x1x1x256xf32> to vector<1x256xf32>
    %c2_11 = arith.constant 2 : index
    %13 = memref.load %arg2[%c2_11] : memref<4xf32, #tpu.memory_space<smem>>
    %14 = vector.broadcast %13 : f32 to vector<1x256xf32>
    %15 = arith.mulf %12, %14 : vector<1x256xf32>
    %16 = arith.addf %10, %15 : vector<1x256xf32>
    %c0_12 = arith.constant 0 : index
    %c3 = arith.constant 3 : index
    %c0_13 = arith.constant 0 : index
    %c0_14 = arith.constant 0 : index
    %17 = vector.load %arg3[%c0_12, %c3, %c0_13, %c0_14] : memref<1x4x1x256xf32, #tpu.memory_space<vmem>>, vector<1x1x1x256xf32>
    %18 = vector.shape_cast %17 : vector<1x1x1x256xf32> to vector<1x256xf32>
    %c3_15 = arith.constant 3 : index
    %19 = memref.load %arg2[%c3_15] : memref<4xf32, #tpu.memory_space<smem>>
    %20 = vector.broadcast %19 : f32 to vector<1x256xf32>
    %21 = arith.mulf %18, %20 : vector<1x256xf32>
    %22 = arith.addf %16, %21 : vector<1x256xf32>
    %23 = math.tanh %22 : vector<1x256xf32>
    %c0_16 = arith.constant 0 : index
    %c0_17 = arith.constant 0 : index
    %c0_18 = arith.constant 0 : index
    %c0_19 = arith.constant 0 : index
    %24 = vector.load %arg4[%c0_16, %c0_17, %c0_18, %c0_19] : memref<1x1x1x256xf32, #tpu.memory_space<vmem>>, vector<1x1x1x256xf32>
    %25 = vector.shape_cast %24 : vector<1x1x1x256xf32> to vector<1x256xf32>
    %26 = vector.shape_cast %23 : vector<1x256xf32> to vector<1x1x1x256xf32>
    tpu.vector_store %arg4[%c0_16, %c0_17, %c0_18, %c0_19], %26 {strides = array<i32>} : memref<1x1x1x256xf32, #tpu.memory_space<vmem>>, vector<1x1x1x256xf32>,
    return
  }
  func.func @transform_0(%arg0: i32, %arg1: i32, %arg2: memref<4xf32, #tpu.memory_space<smem>>) -> (i32, i32, i32, i32) {
    %c0_i32 = arith.constant 0 : i32
    %c0_i32_0 = arith.constant 0 : i32
    %c0_i32_1 = arith.constant 0 : i32
    return %arg0, %c0_i32, %arg1, %c0_i32_0 : i32, i32, i32, i32
  }
  func.func @transform_1(%arg0: i32, %arg1: i32, %arg2: memref<4xf32, #tpu.memory_space<smem>>) -> (i32, i32, i32, i32) {
    %c0_i32 = arith.constant 0 : i32
    %c0_i32_0 = arith.constant 0 : i32
    %c0_i32_1 = arith.constant 0 : i32
    return %arg0, %c0_i32, %arg1, %c0_i32_0 : i32, i32, i32, i32
  }
}

</mosaic_0001>

<llo_original>
// kernel: tpu_custom_call.1
$region0: #{tpu_custom_call.1}
  #allocation0 [shape = 'u32[]', space=smem, size = 0x4, offset = 0x4, fixed_abs, tag = 'smem constant byte address 0x4 - core index']
  #allocation1 [shape = 'u32[144,128]{1,0:T(1,128)}', space=vmem, size = 0x12000, scoped, tag = 'internal scratch']
  #allocation2 [shape = 's32[1]{0}', space=sflag, size = 0x4, scoped, tag = 'scoped memory for tpu_custom_call.1']
  #allocation3 [shape = 'u8[512]{0}', space=smem, size = 0x200, scoped, tag = 'prefetched SMEM operand 0']
  %s0 = inlined_call_operand.hbm [shape: f32[4], index: 0, kind: input, shape index: {}]
  %s1 = inlined_call_operand.hbm [shape: f32[2,4,1,256], index: 1, kind: input, shape index: {}]
  %s2 = inlined_call_operand.hbm [shape: f32[2,1,1,256], index: 2, kind: output, shape index: {}]
  %s3 = sld [smem:[#allocation0]]
  $region41: #{tpu_custom_call.1} parent=0
    _
  %s5 = ssub.s32 1, %s3
  %s6 = scalar_select 0, %s5, %s3
  %8 = dma.hbm_to_smem %s0, 16, [#allocation3], [#allocation2]
  %9 = dma.done [#allocation2], 16
  %10 = sfence
  $region1: #{tpu_custom_call.1} parent=0
    #allocation4 [shape = 'u8[8192]{0}', space=vmem, size = 0x2000, scoped, tag = 'input window, operand 1']
    #allocation5 [shape = 's32[2]{0}', space=sflag, size = 0x8, scoped, tag = 'scoped memory for tpu_custom_call.1']
    #allocation6 [shape = 's32[2]{0}', space=sflag, size = 0x8, scoped, tag = 'scoped memory for tpu_custom_call.1']
    #allocation7 [shape = 'u8[2048]{0}', space=vmem, size = 0x800, scoped, tag = 'output window, operand 0']
    %11 = vsyncpa [#allocation5], 0
    %s12 = scalar_lea.sflag [#allocation5], 1
    %13 = vsyncpa %s12, 0
    %14 = vsyncpa [#allocation6], 0
    %s15 = scalar_lea.sflag [#allocation6], 1
    %16 = vsyncpa %s15, 0
    loop: start=0, step=1, limit=4
    $region2: #{tpu_custom_call.1} parent=1 // loop_pre_header
      _
    $region3: #{tpu_custom_call.1} parent=1 // loop_header
      %s18 = sphi 0, %s22
      %p19 = scmp.ge.s32.totalorder %s18, 4
      %s25 = sphi 0, %s37
      %s26 = sphi 0, %s33
      %s27 = sphi 0, %s25
      %s28 = sphi 0, %s26
      %s29 = sphi 0, %s27
      %s30 = sphi 0, %s28
      %s42 = sphi 0, %s44
      %s45 = sphi 0, %s42
      %s46 = sphi 0, %s45
      %s62 = sphi 0, %s46
      %s70 = sphi 0, %s72
      %s73 = sphi 0, %s70
      %s74 = sphi 0, %s73
      %s90 = sphi 0, %s74
    $region4: #{tpu_custom_call.1} parent=1 // loop_header_branch
      %21 = sbr.rel (%p19) target = $region8
    $region5: #{tpu_custom_call.1} parent=1 // loop_body
      %s23 = ssub.s32 %s18, 1
      %s24 = ssub.s32 %s18, 2
      %s31 = sadd.s32 1, %s26
      %p32 = scmp.ge.s32.totalorder %s31, 1
      %s33 = scalar_select %p32, 0, %s31
      %s34 = sadd.s32 1, %s25
      %s35 = scalar_select %p32, %s34, %s25
      %p36 = scmp.ge.s32.totalorder %s35, 2
      %s37 = scalar_select %p36, 0, %s35
      %s38 = ssub.s32 %s25, %s37
      %s39 = ssub.s32 %s26, %s33
      %s40 = sor.u32 %s38, %s39
      %p41 = scmp.eq.s32.totalorder %s40, 0
      %s43 = sadd.s32 %s42, 1
      %s44 = scalar_select %p41, %s42, %s43
      %p47 = pneg %p41
      %p48 = scmp.eq.s32.totalorder %s18, 1
      %p49 = por %p47, %p48
      %p50 = scmp.ne.s32.totalorder %s42, %s45
      %p51 = scmp.eq.s32.totalorder %s18, 0
      %p52 = por %p50, %p51
      %p53 = scmp.ne.s32.totalorder %s42, %s45
      %p54 = scmp.eq.s32.totalorder %s23, 1
      %p55 = por %p53, %p54
      %p56 = scmp.ne.s32.totalorder %s45, %s46
      %p57 = scmp.eq.s32.totalorder %s23, 0
      %p58 = por %p56, %p57
      %p59 = scmp.ne.s32.totalorder %s45, %s46
      %p60 = scmp.eq.s32.totalorder %s24, 1
      %p61 = por %p59, %p60
      %p63 = scmp.ne.s32.totalorder %s46, %s62
      %p64 = scmp.eq.s32.totalorder %s24, 0
      %p65 = por %p63, %p64
      %s66 = ssub.s32 %s25, %s37
      %s67 = ssub.s32 %s26, %s33
      %s68 = sor.u32 %s66, %s67
      %p69 = scmp.eq.s32.totalorder %s68, 0
      %s71 = sadd.s32 %s70, 1
      %s72 = scalar_select %p69, %s70, %s71
      %p75 = pneg %p69
      %p76 = scmp.eq.s32.totalorder %s18, 1
      %p77 = por %p75, %p76
      %p78 = scmp.ne.s32.totalorder %s70, %s73
      %p79 = scmp.eq.s32.totalorder %s18, 0
      %p80 = por %p78, %p79
      %p81 = scmp.ne.s32.totalorder %s70, %s73
      %p82 = scmp.eq.s32.totalorder %s23, 1
      %p83 = por %p81, %p82
      %p84 = scmp.ne.s32.totalorder %s73, %s74
      %p85 = scmp.eq.s32.totalorder %s23, 0
      %p86 = por %p84, %p85
      %p87 = scmp.ne.s32.totalorder %s73, %s74
      %p88 = scmp.eq.s32.totalorder %s24, 1
      %p89 = por %p87, %p88
      %p91 = scmp.ne.s32.totalorder %s74, %s90
      %p92 = scmp.eq.s32.totalorder %s24, 0
      %p93 = por %p91, %p92
      %p94 = scmp.le.s32.totalorder 1, %s18
      %p95 = scmp.lt.s32.totalorder %s18, 3
      %p96 = pnand %p94, %p95
      %p97 = pneg %p96
      // Predicated region
      $region9: #{tpu_custom_call.1} parent=5 // pred_check
        _
      $region10: #{tpu_custom_call.1} parent=5 // pred_check_branch
        %99 = sbr.rel (%p96) target = $region12
      $region11: #{tpu_custom_call.1} parent=5 // pred_region
        %s100 = ssub.s32 %s18, 1
      $region12: #{tpu_custom_call.1} parent=5 // pred_fallthru
        _
      %p101 = scmp.lt.s32.totalorder %s18, 2
      // Predicated region
      $region13: #{tpu_custom_call.1} parent=5 // pred_check
        %p102 = pneg %p101
      $region14: #{tpu_custom_call.1} parent=5 // pred_check_branch
        %104 = sbr.rel (%p102) target = $region16
      $region15: #{tpu_custom_call.1} parent=5 // pred_region
        // Predicated region
        $region17: #{tpu_custom_call.1} parent=15 // pred_check
          %p105 = pneg %p52
        $region18: #{tpu_custom_call.1} parent=15 // pred_check_branch
          %107 = sbr.rel (%p105) target = $region20
        $region19: #{tpu_custom_call.1} parent=15 // pred_region
          %s108 = sand.u32 %s42, 1
          %s109 = scalar_lea.sflag [#allocation5], %s108
          %s110 = sand.u32 %s42, 1
          %s111 = smul.addr %s110, 8
          %s112 = scalar_lea.vmem [#allocation4], %s111
          %s114 = ssub.s32 128, 128
          %115 = vsyncadd %s109, %s114
          %s116 = smul.addr %s26, 2
          %s117 = smul.addr %s25, 8
          %s118 = sadd.s32 %s116, %s117
          %s119 = smul.addr %s118, 16
          %s120 = scalar_lea.hbm %s1, %s119
          %s121 = sshll.u32 %s112, 4
          %s122 = int_to_ptr.vmem [resolvable:$true] %s121
          %127 = dma.hbm_to_vmem [thread:$0]  %s120, 128, %s122, %s109, 32, 32, 2
        $region20: #{tpu_custom_call.1} parent=15 // pred_fallthru
          _
      $region16: #{tpu_custom_call.1} parent=5 // pred_fallthru
        _
      %p128 = scmp.le.s32.totalorder 1, %s18
      %p129 = scmp.lt.s32.totalorder %s18, 3
      %p130 = pnand %p128, %p129
      %p131 = pneg %p130
      // Predicated region
      $region21: #{tpu_custom_call.1} parent=5 // pred_check
        _
      $region22: #{tpu_custom_call.1} parent=5 // pred_check_branch
        %133 = sbr.rel (%p130) target = $region24
      $region23: #{tpu_custom_call.1} parent=5 // pred_region
        %s134 = ssub.s32 %s18, 1
        %s135 = sand.u32 %s45, 1
        %s136 = scalar_lea.sflag [#allocation5], %s135
        %s137 = sand.u32 %s45, 1
        %s138 = smul.addr %s137, 8
        %s139 = scalar_lea.vmem [#allocation4], %s138
        // Predicated region
        $region25: #{tpu_custom_call.1} parent=23 // pred_check
          %p140 = pneg %p58
        $region26: #{tpu_custom_call.1} parent=23 // pred_check_branch
          %142 = sbr.rel (%p140) target = $region28
        $region27: #{tpu_custom_call.1} parent=23 // pred_region
          %143 = dma.done %s136, 128
        $region28: #{tpu_custom_call.1} parent=23 // pred_fallthru
          _
        %s144 = sand.u32 %s45, 1
        %s145 = scalar_lea.sflag [#allocation5], %s144
        %s146 = sand.u32 %s45, 1
        %s147 = smul.addr %s146, 8
        %s148 = scalar_lea.vmem [#allocation4], %s147
        %p149 = pneg %p58
        %p150 = pneg %p55
        %p151 = pneg %p86
        %p152 = pneg %p83
        %s153 = sand.u32 %s73, 1
        %s154 = scalar_lea.sflag [#allocation6], %s153
        %s155 = sand.u32 %s73, 1
        %s156 = smul.addr %s155, 2
        %s157 = scalar_lea.vmem [#allocation7], %s156
        %v158 = vld [vmem:[%s139] sm:$0x3]
        %s159 = sld [smem:[#allocation3]]
        %v160 = vstv %s159
        %v161 = vmul.f32 %v158, %v160
        %s162 = scalar_lea.vmem %s139, 2 [#allocation4]
        %v163 = vld [vmem:[%s162] sm:$0x3]
        %s164 = sld [smem:[#allocation3 + $0x1]]
        %v165 = vstv %s164
        %v166 = vmul.f32 %v163, %v165
        %v167 = vadd.f32 %v161, %v166
        %s168 = scalar_lea.vmem %s139, 4 [#allocation4]
        %v169 = vld [vmem:[%s168] sm:$0x3]
        %s170 = sld [smem:[#allocation3 + $0x2]]
        %v171 = vstv %s170
        %v172 = vmul.f32 %v169, %v171
        %v173 = vadd.f32 %v167, %v172
        %s174 = scalar_lea.vmem %s139, 6 [#allocation4]
        %v175 = vld [vmem:[%s174] sm:$0x3]
        %s176 = sld [smem:[#allocation3 + $0x3]]
        %v177 = vstv %s176
        %v178 = vmul.f32 %v175, %v177
        %v179 = vadd.f32 %v173, %v178
        %v180 = vtanh.pop %v179
        %v181 = vlaneseq
        %vm182 = vcmp.ge.s32.totalorder %v181, 0
        %vm183 = vcmp.lt.s32.totalorder %v181, 256
        %vm184 = vmand %vm182, %vm183
        %185 = vst.msk [vmem:[%s157] sm:$0x3] %vm184, %v180
        %s186 = sand.u32 %s73, 1
        %s187 = scalar_lea.sflag [#allocation6], %s186
        %s188 = sand.u32 %s73, 1
        %s189 = smul.addr %s188, 2
        %s190 = scalar_lea.vmem [#allocation7], %s189
        // Predicated region
        $region29: #{tpu_custom_call.1} parent=23 // pred_check
          %p191 = pneg %p83
        $region30: #{tpu_custom_call.1} parent=23 // pred_check_branch
          %193 = sbr.rel (%p191) target = $region32
        $region31: #{tpu_custom_call.1} parent=23 // pred_region
          %s195 = ssub.s32 32, 32
          %196 = vsyncadd %s187, %s195
          %s197 = smul.addr %s28, 2
          %s198 = smul.addr %s27, 2
          %s199 = sadd.s32 %s197, %s198
          %s200 = smul.addr %s199, 16
          %s201 = scalar_lea.hbm %s2, %s200
          %s203 = sshll.u32 %s190, 4
          %s204 = int_to_ptr.vmem [resolvable:$true] %s203
          %206 = dma.vmem_to_hbm [thread:$0]  %s204, 32, %s201, %s187
        $region32: #{tpu_custom_call.1} parent=23 // pred_fallthru
          _
      $region24: #{tpu_custom_call.1} parent=5 // pred_fallthru
        _
      %p207 = scmp.le.s32.totalorder 2, %s18
      // Predicated region
      $region33: #{tpu_custom_call.1} parent=5 // pred_check
        %p208 = pneg %p207
      $region34: #{tpu_custom_call.1} parent=5 // pred_check_branch
        %210 = sbr.rel (%p208) target = $region36
      $region35: #{tpu_custom_call.1} parent=5 // pred_region
        %s211 = ssub.s32 %s18, 2
        // Predicated region
        $region37: #{tpu_custom_call.1} parent=35 // pred_check
          %p212 = pneg %p89
        $region38: #{tpu_custom_call.1} parent=35 // pred_check_branch
          %214 = sbr.rel (%p212) target = $region40
        $region39: #{tpu_custom_call.1} parent=35 // pred_region
          %s215 = sand.u32 %s74, 1
          %s216 = scalar_lea.sflag [#allocation6], %s215
          %s217 = sand.u32 %s74, 1
          %s218 = smul.addr %s217, 2
          %s219 = scalar_lea.vmem [#allocation7], %s218
          %220 = dma.done %s216, 32
        $region40: #{tpu_custom_call.1} parent=35 // pred_fallthru
          _
      $region36: #{tpu_custom_call.1} parent=5 // pred_fallthru
        _
    $region6: #{tpu_custom_call.1} parent=1 // loop_footer
      %s22 = sadd.s32 1, %s18
    $region7: #{tpu_custom_call.1} parent=1 // loop_footer_branch
      %17 = sbr.rel target = $region3
    $region8: #{tpu_custom_call.1} parent=1 // loop_exit
      _
    %221 = vsyncpa [#allocation5], 1
    %s222 = scalar_lea.sflag [#allocation5], 1
    %223 = vsyncpa %s222, 1
    %224 = vsyncpa [#allocation6], 1
    %s225 = scalar_lea.sflag [#allocation6], 1
    %226 = vsyncpa %s225, 1

</llo_original>
